<compile_context>
chip_gen: v7x
topology: tpu7x:2x2x1
jax: 0.10.0
libtpu: 0.0.40
codegen_flags: <defaults>
</compile_context>

<pallas_src>
import functools

import jax
import jax.numpy as jnp
from jax import lax
from jax.experimental import pallas as pl
from jax.experimental.pallas import tpu as pltpu


def _round_up(v, m):
    return ((v + m - 1) // m) * m


def _vmem_limit(bytes_needed):
    # Actual footprint + compiler-scratch headroom, clamped to a range valid on
    # v5e/v6e (128 MiB physical VMEM) and v7x (64 MiB per TensorCore).
    return int(min(max(bytes_needed + (6 << 20), 16 << 20), 48 << 20))


# ----------------------------------------------------------------------- kernels


def _acil_resident_kernel(x_ref, wb_ref, wa_ref, o_ref, *, tk, num_k):
    """One M tile; both weights fully VMEM-resident; K chunked in-kernel.

      x_ref  : (tm, input_dim)      input rows (original dtype, cast in-kernel)
      wb_ref : (input_dim, bs_pad)  bf16 random-buffer weight (transposed)
      wa_ref : (bs_pad, nc_pad)     bf16 analytic weight (class-padded)
      o_ref  : (tm, nc_pad)         f32 lane-dense output tile (accumulator)
    """
    x = x_ref[...].astype(wb_ref.dtype)     # cast once per tile (cheap VPU work)
    o_ref[...] = jnp.zeros_like(o_ref)

    def body(k, carry):
        ks = pl.multiple_of(k * tk, tk)
        # (tm, tk) f32 hidden chunk: stays in vregs / small VMEM, never the full
        # (tm, buffer_size) activation.
        h = jnp.maximum(
            jnp.dot(x, wb_ref[:, pl.ds(ks, tk)],
                    preferred_element_type=jnp.float32),
            0.0,
        )
        o_ref[...] += jnp.dot(h.astype(wa_ref.dtype), wa_ref[pl.ds(ks, tk), :],
                              preferred_element_type=jnp.float32)
        return carry

    lax.fori_loop(0, num_k, body, 0, unroll=num_k <= 8)


def _acil_streamed_kernel(x_ref, wb_ref, wa_ref, o_ref):
    """Single M tile; weights streamed along buffer_size (the grid axis).

      x_ref  : (tm, input_dim)   constant block index -> DMA'd once
      wb_ref : (input_dim, tk)   k-th K chunk of the random-buffer weight
      wa_ref : (tk, nc_pad)      k-th K chunk of the analytic weight
      o_ref  : (tm, nc_pad)      resident f32 accumulator (constant block index)
    """
    @pl.when(pl.program_id(0) == 0)
    def _():
        o_ref[...] = jnp.zeros_like(o_ref)

    h = jnp.maximum(
        jnp.dot(x_ref[...].astype(wb_ref.dtype), wb_ref[...],
                preferred_element_type=jnp.float32),
        0.0,
    )
    o_ref[...] += jnp.dot(h.astype(wa_ref.dtype), wa_ref[...],
                          preferred_element_type=jnp.float32)


# ------------------------------------------------------------------- weight prep


def prepare_acil_weights(w_buffer, w_analytic, *, compute_dtype=jnp.bfloat16):
    """One-time weight preparation (hoisted out of every forward call): transpose the
    frozen random projection, zero-pad buffer_size to a multiple of 256 (MXU-native K
    chunks) and num_classes to a multiple of 128 lanes (kept at exactly 128 when
    num_classes <= 128), cast to the MXU operand dtype.  Pads are zeros and contribute
    nothing to the result."""
    buffer_size, input_dim = w_buffer.shape
    assert w_analytic.shape[0] == buffer_size
    num_classes = w_analytic.shape[1]

    nc_pad = max(128, _round_up(num_classes, 128))
    bs_pad = _round_up(buffer_size, 256)

    wb_t = jnp.pad(jnp.transpose(w_buffer),
                   ((0, 0), (0, bs_pad - buffer_size))).astype(compute_dtype)
    wa_pad = jnp.pad(w_analytic,
                     ((0, bs_pad - buffer_size), (0, nc_pad - num_classes))
                     ).astype(compute_dtype)
    return wb_t, wa_pad


# ----------------------------------------------------------------------- forward


@functools.partial(jax.jit,
                   static_argnames=("num_classes", "tm", "tk", "weight_buffers"))
def acil_classifier_forward(x, wb_t, wa_pad, *, num_classes, tm=256, tk=512,
                            weight_buffers=1):
    """x: (..., input_dim); wb_t: (input_dim, bs_pad), wa_pad: (bs_pad, nc_pad) from
    prepare_acil_weights.  Returns (..., num_classes) float32."""
    input_dim = x.shape[-1]
    assert wb_t.shape[0] == input_dim
    bs_pad, nc_pad = wa_pad.shape
    assert wb_t.shape[1] == bs_pad

    lead = x.shape[:-1]
    x2d = x.reshape(-1, input_dim)
    m = x2d.shape[0]

    # K chunk: multiple of 256 preferred (2x256x256 MXU on v6e/v7x); halve (>=128,
    # the v5e MXU dim) until it divides the padded buffer size.
    tk_eff = max(128, min(tk, bs_pad))
    while bs_pad % tk_eff != 0:
        tk_eff //= 2
    num_k = bs_pad // tk_eff

    # M tiling: 256 rows fills the MXU for big M; small M rounds up to a multiple of
    # 16 (bf16 packs 16 rows per vreg sublane group).  Pad rows are zeros.
    tm_eff = tm if m >= tm else max(16, _round_up(m, 16))
    m_pad = _round_up(m, tm_eff)
    num_m = m_pad // tm_eff
    if m_pad != m:
        x2d = jnp.pad(x2d, ((0, m_pad - m), (0, 0)))

    w_itemsize = jnp.dtype(wb_t.dtype).itemsize
    x_itemsize = jnp.dtype(x2d.dtype).itemsize
    cost = pl.CostEstimate(
        flops=2 * m_pad * bs_pad * (input_dim + nc_pad),
        transcendentals=0,
        bytes_accessed=(x2d.size * x_itemsize
                        + (wb_t.size + wa_pad.size) * w_itemsize
                        + m_pad * nc_pad * 4),
    )

    x_tile_b = 2 * tm_eff * input_dim * x_itemsize     # double-buffered x tile
    out_tile_b = 2 * tm_eff * nc_pad * 4               # double-buffered f32 output
    h_chunk_b = tm_eff * tk_eff * 6                    # f32 chunk + bf16 copy

    if num_m == 1:
        # ---- single M tile (typical DETR inference): weight-HBM-bound.  Stream the
        # weights along K so chunk k+1's DMA overlaps chunk k's matmuls. ----
        chunk_b = 2 * (input_dim * tk_eff + tk_eff * nc_pad) * w_itemsize
        vmem_need = chunk_b + x_tile_b + out_tile_b + h_chunk_b
        out = pl.pallas_call(
            _acil_streamed_kernel,
            out_shape=jax.ShapeDtypeStruct((m_pad, nc_pad), jnp.float32),
            grid_spec=pltpu.PrefetchScalarGridSpec(
                num_scalar_prefetch=0,
                grid=(num_k,),
                in_specs=[
                    pl.BlockSpec((tm_eff, input_dim), lambda k: (0, 0)),
                    pl.BlockSpec((input_dim, tk_eff), lambda k: (0, k)),
                    pl.BlockSpec((tk_eff, nc_pad), lambda k: (k, 0)),
                ],
                out_specs=pl.BlockSpec((tm_eff, nc_pad), lambda k: (0, 0)),
            ),
            compiler_params=pltpu.CompilerParams(
                dimension_semantics=("arbitrary",),      # K is a reduction axis
                vmem_limit_bytes=_vmem_limit(vmem_need),
            ),
            cost_estimate=cost,
        )(x2d, wb_t, wa_pad)
    else:
        # ---- multiple M tiles: weights VMEM-resident (constant block index), M is a
        # parallel grid axis (megacore on v7x), K chunked inside the kernel. ----
        if weight_buffers == 1:
            # Constant-index weights are never re-fetched; single-buffer them to halve
            # their VMEM footprint (6 MiB vs 12 MiB at production sizes).
            w_mode = dict(pipeline_mode=pl.Buffered(1))
        else:
            w_mode = {}
        vmem_need = (weight_buffers * (wb_t.size + wa_pad.size) * w_itemsize
                     + x_tile_b + out_tile_b + h_chunk_b)
        out = pl.pallas_call(
            functools.partial(_acil_resident_kernel, tk=tk_eff, num_k=num_k),
            out_shape=jax.ShapeDtypeStruct((m_pad, nc_pad), jnp.float32),
            grid_spec=pltpu.PrefetchScalarGridSpec(
                num_scalar_prefetch=0,
                grid=(num_m,),
                in_specs=[
                    pl.BlockSpec((tm_eff, input_dim), lambda i: (i, 0)),
                    pl.BlockSpec((input_dim, bs_pad), lambda i: (0, 0), **w_mode),
                    pl.BlockSpec((bs_pad, nc_pad), lambda i: (0, 0), **w_mode),
                ],
                out_specs=pl.BlockSpec((tm_eff, nc_pad), lambda i: (i, 0)),
            ),
            compiler_params=pltpu.CompilerParams(
                dimension_semantics=("parallel",),
                vmem_limit_bytes=_vmem_limit(vmem_need),
            ),
            cost_estimate=cost,
        )(x2d, wb_t, wa_pad)

    return out[:m, :num_classes].reshape(*lead, num_classes)


# ------------------------------------------------------------------------- test


if __name__ == "__main__":
    # Small shapes consistent with the module:
    #   DETR decoder output X: (batch=2, num_queries=8, input_dim=32)
    #   buffer_size=512 (scaled-down stand-in for 8192), num_classes=16.
    input_dim, buffer_size, num_classes = 32, 512, 16

    key = jax.random.PRNGKey(0)
    kx, kx2, kb, ka = jax.random.split(key, 4)

    # RandomBuffer weight: frozen random projection, nn.Linear layout (out, in).
    bound = 1.0 / (input_dim ** 0.5)
    w_buffer = jax.random.uniform(kb, (buffer_size, input_dim),
                                  minval=-bound, maxval=bound, dtype=jnp.float32)
    # Analytic linear weight; the real module grows this via recursive fitting.
    w_analytic = 0.01 * jax.random.normal(ka, (buffer_size, num_classes),
                                          dtype=jnp.float32)

    # One-time weight prep (transpose + pads + bf16 cast), outside the forward.
    wb_t, wa_pad = prepare_acil_weights(w_buffer, w_analytic)

    def reference_bf16(x):
        x2 = x.reshape(-1, input_dim).astype(jnp.bfloat16)
        h = jnp.maximum(jnp.dot(x2, w_buffer.T.astype(jnp.bfloat16),
                                preferred_element_type=jnp.float32), 0.0)
        y = jnp.dot(h.astype(jnp.bfloat16), w_analytic.astype(jnp.bfloat16),
                    preferred_element_type=jnp.float32)
        return y.reshape(*x.shape[:-1], num_classes)

    def reference_f32(x):
        x2 = x.reshape(-1, input_dim)
        return (jnp.maximum(x2 @ w_buffer.T, 0.0) @ w_analytic
                ).reshape(*x.shape[:-1], num_classes)

    # --- case 1: typical DETR batch (single M tile -> K-streamed weight path) ---
    x1 = jax.random.normal(kx, (2, 8, input_dim), dtype=jnp.float32)
    y1 = jax.block_until_ready(
        acil_classifier_forward(x1, wb_t, wa_pad, num_classes=num_classes, tk=128))
    assert y1.shape == (2, 8, num_classes)
    assert jnp.allclose(y1, reference_bf16(x1), atol=2e-3, rtol=2e-2)
    assert jnp.allclose(y1, reference_f32(x1), atol=1e-2, rtol=1e-1)

    # --- case 2: larger M (multiple tiles -> resident weights, chunked K loop) ---
    x2 = jax.random.normal(kx2, (3, 100, input_dim), dtype=jnp.float32)
    try:
        y2 = jax.block_until_ready(
            acil_classifier_forward(x2, wb_t, wa_pad, num_classes=num_classes,
                                    tk=256))
    except Exception:
        # pl.Buffered(1) (single-buffered resident weights) unavailable on this
        # jax/libtpu build -> fall back to default double-buffered weights.
        y2 = jax.block_until_ready(
            acil_classifier_forward(x2, wb_t, wa_pad, num_classes=num_classes,
                                    tk=256, weight_buffers=2))
    assert y2.shape == (3, 100, num_classes)
    assert jnp.allclose(y2, reference_bf16(x2), atol=2e-3, rtol=2e-2)
    assert jnp.allclose(y2, reference_f32(x2), atol=1e-2, rtol=1e-1)

    print("KERNEL_OK")
</pallas_src>

<mosaic_0001>
module attributes {stable_mosaic.version = 11 : i64} {
  func.func @_acil_streamed_kernel(%arg0: i32, %arg1: memref<16x32xf32, #tpu.memory_space<vmem>>, %arg2: memref<32x128xbf16, #tpu.memory_space<vmem>>, %arg3: memref<128x128xbf16, #tpu.memory_space<vmem>>, %arg4: memref<16x128xf32, #tpu.memory_space<vmem>>) attributes {dimension_semantics = [#tpu.dimension_semantics<arbitrary>], iteration_bounds = array<i64: 4>, scalar_prefetch = 0 : i64, scratch_operands = 0 : i64, tpu.core_type = #tpu.core_type<tc>, window_params = [{pipeline_mode = #tpu.pipeline_mode<synchronous>, transform_indices = @transform_0, window_bounds = array<i64: 16, 32>}, {transform_indices = @transform_1, window_bounds = array<i64: 32, 128>}, {transform_indices = @transform_2, window_bounds = array<i64: 128, 128>}, {pipeline_mode = #tpu.pipeline_mode<synchronous>, transform_indices = @transform_3, window_bounds = array<i64: 16, 128>}]} {
    %c0_i32 = arith.constant 0 : i32
    %0 = arith.cmpi eq, %arg0, %c0_i32 : i32
    %1 = arith.extui %0 : i1 to i32
    %c0_i32_0 = arith.constant 0 : i32
    %2 = arith.cmpi ne, %1, %c0_i32_0 : i32
    scf.if %2 {
      %cst_12 = arith.constant 0.000000e+00 : f32
      %15 = vector.broadcast %cst_12 : f32 to vector<16x128xf32>
      %c0_13 = arith.constant 0 : index
      %c0_14 = arith.constant 0 : index
      %16 = vector.load %arg4[%c0_13, %c0_14] : memref<16x128xf32, #tpu.memory_space<vmem>>, vector<16x128xf32>
      tpu.vector_store %arg4[%c0_13, %c0_14], %15 {strides = array<i32>} : memref<16x128xf32, #tpu.memory_space<vmem>>, vector<16x128xf32>,
    } else {
    }
    %c0 = arith.constant 0 : index
    %c0_1 = arith.constant 0 : index
    %3 = vector.load %arg1[%c0, %c0_1] : memref<16x32xf32, #tpu.memory_space<vmem>>, vector<16x32xf32>
    %4 = arith.truncf %3 : vector<16x32xf32> to vector<16x32xbf16>
    %c0_2 = arith.constant 0 : index
    %c0_3 = arith.constant 0 : index
    %5 = vector.load %arg2[%c0_2, %c0_3] : memref<32x128xbf16, #tpu.memory_space<vmem>>, vector<32x128xbf16>
    %cst = arith.constant dense<0.000000e+00> : vector<16x128xf32>
    %6 = tpu.matmul %4, %5, %cst {dimension_numbers = #tpu.dot_dimension_numbers<[1], [0], [0], [1], [0, 0, 1, 1], [], []>} : vector<16x32xbf16>, vector<32x128xbf16>, vector<16x128xf32> -> vector<16x128xf32>
    %cst_4 = arith.constant 0.000000e+00 : f32
    %7 = vector.broadcast %cst_4 : f32 to vector<16x128xf32>
    %8 = arith.maximumf %6, %7 : vector<16x128xf32>
    %c0_5 = arith.constant 0 : index
    %c0_6 = arith.constant 0 : index
    %9 = vector.load %arg4[%c0_5, %c0_6] : memref<16x128xf32, #tpu.memory_space<vmem>>, vector<16x128xf32>
    %10 = arith.truncf %8 : vector<16x128xf32> to vector<16x128xbf16>
    %c0_7 = arith.constant 0 : index
    %c0_8 = arith.constant 0 : index
    %11 = vector.load %arg3[%c0_7, %c0_8] : memref<128x128xbf16, #tpu.memory_space<vmem>>, vector<128x128xbf16>
    %cst_9 = arith.constant dense<0.000000e+00> : vector<16x128xf32>
    %12 = tpu.matmul %10, %11, %cst_9 {dimension_numbers = #tpu.dot_dimension_numbers<[1], [0], [0], [1], [0, 0, 1, 1], [], []>} : vector<16x128xbf16>, vector<128x128xbf16>, vector<16x128xf32> -> vector<16x128xf32>
    %13 = arith.addf %9, %12 : vector<16x128xf32>
    %c0_10 = arith.constant 0 : index
    %c0_11 = arith.constant 0 : index
    %14 = vector.load %arg4[%c0_10, %c0_11] : memref<16x128xf32, #tpu.memory_space<vmem>>, vector<16x128xf32>
    tpu.vector_store %arg4[%c0_10, %c0_11], %13 {strides = array<i32>} : memref<16x128xf32, #tpu.memory_space<vmem>>, vector<16x128xf32>,
    return
  }
  func.func @transform_0(%arg0: i32) -> (i32, i32) {
    %c0_i32 = arith.constant 0 : i32
    %c0_i32_0 = arith.constant 0 : i32
    %c0_i32_1 = arith.constant 0 : i32
    return %c0_i32, %c0_i32_0 : i32, i32
  }
  func.func @transform_1(%arg0: i32) -> (i32, i32) {
    %c0_i32 = arith.constant 0 : i32
    %c0_i32_0 = arith.constant 0 : i32
    return %c0_i32, %arg0 : i32, i32
  }
  func.func @transform_2(%arg0: i32) -> (i32, i32) {
    %c0_i32 = arith.constant 0 : i32
    %c0_i32_0 = arith.constant 0 : i32
    return %arg0, %c0_i32 : i32, i32
  }
  func.func @transform_3(%arg0: i32) -> (i32, i32) {
    %c0_i32 = arith.constant 0 : i32
    %c0_i32_0 = arith.constant 0 : i32
    %c0_i32_1 = arith.constant 0 : i32
    return %c0_i32, %c0_i32_0 : i32, i32
  }
}

</mosaic_0001>

<llo_original>
// kernel: acil_classifier_forward.1
$region0: #{acil_classifier_forward.1}
  #allocation0 [shape = 'u32[]', space=smem, size = 0x4, offset = 0x4, fixed_abs, tag = 'smem constant byte address 0x4 - core index']
  #allocation1 [shape = 'u32[144,128]{1,0:T(1,128)}', space=vmem, size = 0x12000, scoped, tag = 'internal scratch']
  %s0 = inlined_call_operand.hbm [shape: f32[16,32], index: 0, kind: input, shape index: {}]
  %s1 = inlined_call_operand.hbm [shape: bf16[32,512], index: 1, kind: input, shape index: {}]
  %s2 = inlined_call_operand.hbm [shape: bf16[512,128], index: 2, kind: input, shape index: {}]
  %s3 = inlined_call_operand.vmem [shape: f32[16,128], index: 3, kind: output, shape index: {}]
  %s4 = sld [smem:[#allocation0]]
  $region61: #{acil_classifier_forward.1} parent=0
    _
  %s6 = ssub.s32 1, %s4
  %s7 = scalar_select 0, %s6, %s4
  $region1: #{acil_classifier_forward.1} parent=0
    #allocation2 [shape = 'u8[8192]{0}', space=vmem, size = 0x2000, scoped, tag = 'input window, operand 0, single buffered']
    #allocation3 [shape = 's32[2]{0}', space=sflag, size = 0x8, scoped, tag = 'scoped memory for acil_classifier_forward.1']
    #allocation4 [shape = 'u8[16384]{0}', space=vmem, size = 0x4000, scoped, tag = 'input window, operand 1']
    #allocation5 [shape = 's32[2]{0}', space=sflag, size = 0x8, scoped, tag = 'scoped memory for acil_classifier_forward.1']
    #allocation6 [shape = 'u8[65536]{0}', space=vmem, size = 0x10000, scoped, tag = 'input window, operand 2']
    %8 = vsyncpa [#allocation3], 0
    %9 = vsyncpa [#allocation5], 0
    %s10 = scalar_lea.sflag [#allocation5], 1
    %11 = vsyncpa %s10, 0
    loop: start=0, step=1, limit=6
    $region2: #{acil_classifier_forward.1} parent=1 // loop_pre_header
      _
    $region3: #{acil_classifier_forward.1} parent=1 // loop_header
      %s13 = sphi 0, %s17
      %p14 = scmp.ge.s32.totalorder %s13, 6
      %s21 = sphi 0, %s21
      %s23 = sphi 0, %s21
      %s24 = sphi 0, %s23
      %s38 = sphi 0, %s24
      %s44 = sphi 0, %s46
      %s47 = sphi 0, %s44
      %s48 = sphi 0, %s47
      %s64 = sphi 0, %s48
      %s70 = sphi 0, %s72
      %s73 = sphi 0, %s70
      %s74 = sphi 0, %s73
      %s90 = sphi 0, %s74
      %s94 = sphi 0, %s94
      %s96 = sphi 0, %s94
      %s97 = sphi 0, %s96
      %s111 = sphi 0, %s97
    $region4: #{acil_classifier_forward.1} parent=1 // loop_header_branch
      %16 = sbr.rel (%p14) target = $region8
    $region5: #{acil_classifier_forward.1} parent=1 // loop_body
      %s18 = ssub.s32 %s13, 1
      %s19 = ssub.s32 %s13, 2
      %s20 = sadd.s32 %s13, 1
      %s22 = sadd.s32 %s21, 1
      %p25 = scmp.eq.s32.totalorder %s13, 3
      %p26 = scmp.ne.s32.totalorder %s21, %s23
      %p27 = scmp.eq.s32.totalorder %s13, 0
      %p28 = por %p26, %p27
      %p29 = scmp.ne.s32.totalorder %s21, %s23
      %p30 = scmp.eq.s32.totalorder %s18, 3
      %p31 = por %p29, %p30
      %p32 = scmp.ne.s32.totalorder %s23, %s24
      %p33 = scmp.eq.s32.totalorder %s18, 0
      %p34 = por %p32, %p33
      %p35 = scmp.ne.s32.totalorder %s23, %s24
      %p36 = scmp.eq.s32.totalorder %s19, 3
      %p37 = por %p35, %p36
      %p39 = scmp.ne.s32.totalorder %s24, %s38
      %p40 = scmp.eq.s32.totalorder %s19, 0
      %p41 = por %p39, %p40
      %s42 = ssub.s32 %s13, %s20
      %p43 = scmp.eq.s32.totalorder %s42, 0
      %s45 = sadd.s32 %s44, 1
      %s46 = scalar_select %p43, %s44, %s45
      %p49 = pneg %p43
      %p50 = scmp.eq.s32.totalorder %s13, 3
      %p51 = por %p49, %p50
      %p52 = scmp.ne.s32.totalorder %s44, %s47
      %p53 = scmp.eq.s32.totalorder %s13, 0
      %p54 = por %p52, %p53
      %p55 = scmp.ne.s32.totalorder %s44, %s47
      %p56 = scmp.eq.s32.totalorder %s18, 3
      %p57 = por %p55, %p56
      %p58 = scmp.ne.s32.totalorder %s47, %s48
      %p59 = scmp.eq.s32.totalorder %s18, 0
      %p60 = por %p58, %p59
      %p61 = scmp.ne.s32.totalorder %s47, %s48
      %p62 = scmp.eq.s32.totalorder %s19, 3
      %p63 = por %p61, %p62
      %p65 = scmp.ne.s32.totalorder %s48, %s64
      %p66 = scmp.eq.s32.totalorder %s19, 0
      %p67 = por %p65, %p66
      %s68 = ssub.s32 %s13, %s20
      %p69 = scmp.eq.s32.totalorder %s68, 0
      %s71 = sadd.s32 %s70, 1
      %s72 = scalar_select %p69, %s70, %s71
      %p75 = pneg %p69
      %p76 = scmp.eq.s32.totalorder %s13, 3
      %p77 = por %p75, %p76
      %p78 = scmp.ne.s32.totalorder %s70, %s73
      %p79 = scmp.eq.s32.totalorder %s13, 0
      %p80 = por %p78, %p79
      %p81 = scmp.ne.s32.totalorder %s70, %s73
      %p82 = scmp.eq.s32.totalorder %s18, 3
      %p83 = por %p81, %p82
      %p84 = scmp.ne.s32.totalorder %s73, %s74
      %p85 = scmp.eq.s32.totalorder %s18, 0
      %p86 = por %p84, %p85
      %p87 = scmp.ne.s32.totalorder %s73, %s74
      %p88 = scmp.eq.s32.totalorder %s19, 3
      %p89 = por %p87, %p88
      %p91 = scmp.ne.s32.totalorder %s74, %s90
      %p92 = scmp.eq.s32.totalorder %s19, 0
      %p93 = por %p91, %p92
      %s95 = sadd.s32 %s94, 1
      %p98 = scmp.eq.s32.totalorder %s13, 3
      %p99 = scmp.ne.s32.totalorder %s94, %s96
      %p100 = scmp.eq.s32.totalorder %s13, 0
      %p101 = por %p99, %p100
      %p102 = scmp.ne.s32.totalorder %s94, %s96
      %p103 = scmp.eq.s32.totalorder %s18, 3
      %p104 = por %p102, %p103
      %p105 = scmp.ne.s32.totalorder %s96, %s97
      %p106 = scmp.eq.s32.totalorder %s18, 0
      %p107 = por %p105, %p106
      %p108 = scmp.ne.s32.totalorder %s96, %s97
      %p109 = scmp.eq.s32.totalorder %s19, 3
      %p110 = por %p108, %p109
      %p112 = scmp.ne.s32.totalorder %s97, %s111
      %p113 = scmp.eq.s32.totalorder %s19, 0
      %p114 = por %p112, %p113
      %p115 = scmp.le.s32.totalorder 1, %s13
      %p116 = scmp.lt.s32.totalorder %s13, 5
      %p117 = pnand %p115, %p116
      %p118 = pneg %p117
      // Predicated region
      $region9: #{acil_classifier_forward.1} parent=5 // pred_check
        _
      $region10: #{acil_classifier_forward.1} parent=5 // pred_check_branch
        %120 = sbr.rel (%p117) target = $region12
      $region11: #{acil_classifier_forward.1} parent=5 // pred_region
        %s121 = ssub.s32 %s13, 1
        // Predicated region
        $region13: #{acil_classifier_forward.1} parent=11 // pred_check
          %p122 = pneg %p34
        $region14: #{acil_classifier_forward.1} parent=11 // pred_check_branch
          %124 = sbr.rel (%p122) target = $region16
        $region15: #{acil_classifier_forward.1} parent=11 // pred_region
          %s126 = ssub.s32 256, 256
          %127 = vsyncadd [#allocation3], %s126
          %s128 = sshll.u32 [#allocation2], 4
          %s129 = int_to_ptr.vmem [resolvable:$true] %s128
          %134 = dma.hbm_to_vmem [thread:$0]  %s0, 256, %s129, [#allocation3], 128, 128, 8
        $region16: #{acil_classifier_forward.1} parent=11 // pred_fallthru
          _
      $region12: #{acil_classifier_forward.1} parent=5 // pred_fallthru
        _
      %p135 = scmp.lt.s32.totalorder %s13, 4
      // Predicated region
      $region17: #{acil_classifier_forward.1} parent=5 // pred_check
        %p136 = pneg %p135
      $region18: #{acil_classifier_forward.1} parent=5 // pred_check_branch
        %138 = sbr.rel (%p136) target = $region20
      $region19: #{acil_classifier_forward.1} parent=5 // pred_region
        // Predicated region
        $region21: #{acil_classifier_forward.1} parent=19 // pred_check
          %p139 = pneg %p54
        $region22: #{acil_classifier_forward.1} parent=19 // pred_check_branch
          %141 = sbr.rel (%p139) target = $region24
        $region23: #{acil_classifier_forward.1} parent=19 // pred_region
          %s142 = sand.u32 %s13, 1
          %s143 = scalar_lea.sflag [#allocation5], %s142
          %s144 = sand.u32 %s44, 1
          %s145 = smul.addr %s144, 16
          %s146 = scalar_lea.vmem [#allocation4], %s145
          %s148 = ssub.s32 256, 256
          %149 = vsyncadd %s143, %s148
          %s150 = smul.addr %s13, 64
          %s151 = scalar_lea.hbm %s1, %s150
          %s152 = sshll.u32 %s146, 4
          %s153 = int_to_ptr.vmem [resolvable:$true] %s152
          %158 = dma.hbm_to_vmem [thread:$0]  %s151, 256, %s153, %s143, 256, 64, 4
        $region24: #{acil_classifier_forward.1} parent=19 // pred_fallthru
          _
        // Predicated region
        $region25: #{acil_classifier_forward.1} parent=19 // pred_check
          %p159 = pneg %p80
        $region26: #{acil_classifier_forward.1} parent=19 // pred_check_branch
          %161 = sbr.rel (%p159) target = $region28
        $region27: #{acil_classifier_forward.1} parent=19 // pred_region
          %s162 = sand.u32 %s13, 1
          %s163 = scalar_lea.sflag [#allocation5], %s162
          %s164 = sand.u32 %s70, 1
          %s165 = smul.addr %s164, 64
          %s166 = scalar_lea.vmem [#allocation6], %s165
          %s167 = smul.u32 16, %s13
          %s169 = ssub.s32 1024, 1024
          %170 = vsyncadd %s163, %s169
          %s171 = smul.addr %s167, 64
          %s172 = scalar_lea.hbm %s2, %s171
          %s173 = sshll.u32 %s166, 4
          %s174 = int_to_ptr.vmem [resolvable:$true] %s173
          %179 = dma.hbm_to_vmem [thread:$0]  %s172, 1024, %s174, %s163, 64, 64, 4
        $region28: #{acil_classifier_forward.1} parent=19 // pred_fallthru
          _
      $region20: #{acil_classifier_forward.1} parent=5 // pred_fallthru
        _
      %p180 = scmp.le.s32.totalorder 1, %s13
      %p181 = scmp.lt.s32.totalorder %s13, 5
      %p182 = pnand %p180, %p181
      %p183 = pneg %p182
      // Predicated region
      $region29: #{acil_classifier_forward.1} parent=5 // pred_check
        _
      $region30: #{acil_classifier_forward.1} parent=5 // pred_check_branch
        %185 = sbr.rel (%p182) target = $region32
      $region31: #{acil_classifier_forward.1} parent=5 // pred_region
        %s186 = ssub.s32 %s13, 1
        // Predicated region
        $region33: #{acil_classifier_forward.1} parent=31 // pred_check
          %p187 = pneg %p34
        $region34: #{acil_classifier_forward.1} parent=31 // pred_check_branch
          %189 = sbr.rel (%p187) target = $region36
        $region35: #{acil_classifier_forward.1} parent=31 // pred_region
          %190 = dma.done [#allocation3], 256
        $region36: #{acil_classifier_forward.1} parent=31 // pred_fallthru
          _
        %s191 = sand.u32 %s18, 1
        %s192 = scalar_lea.sflag [#allocation5], %s191
        %s193 = sand.u32 %s47, 1
        %s194 = smul.addr %s193, 16
        %s195 = scalar_lea.vmem [#allocation4], %s194
        // Predicated region
        $region37: #{acil_classifier_forward.1} parent=31 // pred_check
          %p196 = pneg %p60
        $region38: #{acil_classifier_forward.1} parent=31 // pred_check_branch
          %198 = sbr.rel (%p196) target = $region40
        $region39: #{acil_classifier_forward.1} parent=31 // pred_region
          %199 = dma.done %s192, 256
        $region40: #{acil_classifier_forward.1} parent=31 // pred_fallthru
          _
        %s200 = sand.u32 %s18, 1
        %s201 = scalar_lea.sflag [#allocation5], %s200
        %s202 = sand.u32 %s73, 1
        %s203 = smul.addr %s202, 64
        %s204 = scalar_lea.vmem [#allocation6], %s203
        // Predicated region
        $region41: #{acil_classifier_forward.1} parent=31 // pred_check
          %p205 = pneg %p86
        $region42: #{acil_classifier_forward.1} parent=31 // pred_check_branch
          %207 = sbr.rel (%p205) target = $region44
        $region43: #{acil_classifier_forward.1} parent=31 // pred_region
          %208 = dma.done %s201, 1024
        $region44: #{acil_classifier_forward.1} parent=31 // pred_fallthru
          _
        %p209 = pneg %p34
        %p210 = pneg %p31
        %s211 = sand.u32 %s18, 1
        %s212 = scalar_lea.sflag [#allocation5], %s211
        %s213 = sand.u32 %s47, 1
        %s214 = smul.addr %s213, 16
        %s215 = scalar_lea.vmem [#allocation4], %s214
        %p216 = pneg %p60
        %p217 = pneg %p57
        %s218 = sand.u32 %s18, 1
        %s219 = scalar_lea.sflag [#allocation5], %s218
        %s220 = sand.u32 %s73, 1
        %s221 = smul.addr %s220, 64
        %s222 = scalar_lea.vmem [#allocation6], %s221
        %p223 = pneg %p86
        %p224 = pneg %p83
        %p225 = pneg %p107
        %p226 = pneg %p104
        %s227 = smul.u32 16, %s18
        %p229 = scmp.eq.s32.totalorder %s18, 0
        // Predicated region
        $region45: #{acil_classifier_forward.1} parent=31 // pred_check
          %p230 = pneg %p229
        $region46: #{acil_classifier_forward.1} parent=31 // pred_check_branch
          %232 = sbr.rel (%p230) target = $region48
        $region47: #{acil_classifier_forward.1} parent=31 // pred_region
          %233 = vst [vmem:[%s3] sm:$0xff] 0.0
          %234 = vst [vmem:[%s3 + $0x8] sm:$0xff] 0.0
        $region48: #{acil_classifier_forward.1} parent=31 // pred_fallthru
          _
        %v235 = vld [vmem:[#allocation2] sm:$0xff]
        %v236 = vld [vmem:[#allocation2 + $0x8] sm:$0xff]
        %v237 = vpack.c.bf16 %v236, %v235
        %v238 = vld [vmem:[%s195] sm:$0xf]
        %v239 = vld [vmem:[%s195 + $0x4] sm:$0xf]
        %v240 = vld [vmem:[%s195 + $0x8] sm:$0xf]
        %v241 = vld [vmem:[%s195 + $0xc] sm:$0xf]
        %v246 = vunpack.c.l.b16 %v238
        %v247 = vunpack.c.l.b16 %v239
        %v248 = vunpack.c.l.b16 %v240
        %v249 = vunpack.c.l.b16 %v241
        %v250 = vpack.c.b16 %v247, %v246
        %v251 = vpack.c.b16 %v249, %v248
        %vm254 = vcmask 261120
        %v256 = vsel %vm254, %v237, 0
        %258 = vmatprep.subr.bf16.mxu0 0
        %259 = vmatpush1.bf16.msra.mxu0 %v250
        %260 = vmatprep.subr.bf16.mxu0 0
        %261 = vmatpush1.bf16.msra.mxu0 %v251
        %262 = vmatprep.subr.bf16.mxu0 0
        %263 = vmatpush1.bf16.msra.mxu0 0
        %264 = vmatprep.subr.bf16.mxu0 0
        %265 = vmatpush1.bf16.msra.mxu0 0
        %266 = vmatprep.subr.bf16.mxu0 0
        %267 = vmatpush1.bf16.msra.mxu0 0
        %268 = vmatprep.subr.bf16.mxu0 0
        %269 = vmatpush1.bf16.msra.mxu0 0
        %270 = vmatprep.subr.bf16.mxu0 0
        %271 = vmatpush1.bf16.msra.mxu0 0
        %272 = vmatprep.subr.bf16.mxu0 0
        %273 = vmatpush1.bf16.msra.mxu0 0
        %274 = vmatprep.subr.bf16.mxu0 0
        %275 = vmatpush1.bf16.msra.mxu0 0
        %276 = vmatprep.subr.bf16.mxu0 0
        %277 = vmatpush1.bf16.msra.mxu0 0
        %278 = vmatprep.subr.bf16.mxu0 0
        %279 = vmatpush1.bf16.msra.mxu0 0
        %280 = vmatprep.subr.bf16.mxu0 0
        %281 = vmatpush1.bf16.msra.mxu0 0
        %282 = vmatprep.subr.bf16.mxu0 0
        %283 = vmatpush1.bf16.msra.mxu0 0
        %284 = vmatprep.subr.bf16.mxu0 0
        %285 = vmatpush1.bf16.msra.mxu0 0
        %286 = vmatprep.subr.bf16.mxu0 0
        %287 = vmatpush1.bf16.msra.mxu0 0
        %288 = vmatprep.subr.bf16.mxu0 0
        %289 = vmatpush1.bf16.msra.mxu0 0
        %290 = vmatprep.mubr.bf16.mxu0 0
        %291 = vmatmul.mubr.bf16.gmra.mrb[0].mxu0 %v256
        %v292 = vpop.f32.mrb[0].mxu0
        %v293 = vadd.f32 0.0, %v292
        %v294 = vpop.f32.mrb[0].mxu0
        %v295 = vpop.f32.mrb[0].mxu0
        %v296 = vadd.f32 0.0, %v295
        %v297 = vpop.f32.mrb[0].mxu0
        %298 = vdwg.mxu0
        %v299 = vmax.f32 %v293, 0.0
        %v300 = vmax.f32 %v296, 0.0
        %v301 = vld [vmem:[%s3] sm:$0xff]
        %v302 = vld [vmem:[%s3 + $0x8] sm:$0xff]
        %v303 = vpack.c.bf16 %v300, %v299
        %v304 = vld [vmem:[%s204] sm:$0xf]
        %v305 = vld [vmem:[%s204 + $0x4] sm:$0xf]
        %v306 = vld [vmem:[%s204 + $0x8] sm:$0xf]
        %v307 = vld [vmem:[%s204 + $0xc] sm:$0xf]
        %v308 = vld [vmem:[%s204 + $0x10] sm:$0xf]
        %v309 = vld [vmem:[%s204 + $0x14] sm:$0xf]
        %v310 = vld [vmem:[%s204 + $0x18] sm:$0xf]
        %v311 = vld [vmem:[%s204 + $0x1c] sm:$0xf]
        %v312 = vld [vmem:[%s204 + $0x20] sm:$0xf]
        %v313 = vld [vmem:[%s204 + $0x24] sm:$0xf]
        %v314 = vld [vmem:[%s204 + $0x28] sm:$0xf]
        %v315 = vld [vmem:[%s204 + $0x2c] sm:$0xf]
        %v316 = vld [vmem:[%s204 + $0x30] sm:$0xf]
        %v317 = vld [vmem:[%s204 + $0x34] sm:$0xf]
        %v318 = vld [vmem:[%s204 + $0x38] sm:$0xf]
        %v319 = vld [vmem:[%s204 + $0x3c] sm:$0xf]
        %v336 = vunpack.c.l.b16 %v304
        %v337 = vunpack.c.l.b16 %v305
        %v338 = vunpack.c.l.b16 %v306
        %v339 = vunpack.c.l.b16 %v307
        %v340 = vunpack.c.l.b16 %v308
        %v341 = vunpack.c.l.b16 %v309
        %v342 = vunpack.c.l.b16 %v310
        %v343 = vunpack.c.l.b16 %v311
        %v344 = vunpack.c.l.b16 %v312
        %v345 = vunpack.c.l.b16 %v313
        %v346 = vunpack.c.l.b16 %v314
        %v347 = vunpack.c.l.b16 %v315
        %v348 = vunpack.c.l.b16 %v316
        %v349 = vunpack.c.l.b16 %v317
        %v350 = vunpack.c.l.b16 %v318
        %v351 = vunpack.c.l.b16 %v319
        %v352 = vpack.c.b16 %v337, %v336
        %v353 = vpack.c.b16 %v339, %v338
        %v354 = vpack.c.b16 %v341, %v340
        %v355 = vpack.c.b16 %v343, %v342
        %v356 = vpack.c.b16 %v345, %v344
        %v357 = vpack.c.b16 %v347, %v346
        %v358 = vpack.c.b16 %v349, %v348
        %v359 = vpack.c.b16 %v351, %v350
        %368 = vmatprep.subr.bf16.mxu0 0
        %369 = vmatpush1.bf16.msra.mxu0 %v352
        %370 = vmatprep.subr.bf16.mxu0 0
        %371 = vmatpush1.bf16.msra.mxu0 %v353
        %372 = vmatprep.subr.bf16.mxu0 0
        %373 = vmatpush1.bf16.msra.mxu0 %v354
        %374 = vmatprep.subr.bf16.mxu0 0
        %375 = vmatpush1.bf16.msra.mxu0 %v355
        %376 = vmatprep.subr.bf16.mxu0 0
        %377 = vmatpush1.bf16.msra.mxu0 %v356
        %378 = vmatprep.subr.bf16.mxu0 0
        %379 = vmatpush1.bf16.msra.mxu0 %v357
        %380 = vmatprep.subr.bf16.mxu0 0
        %381 = vmatpush1.bf16.msra.mxu0 %v358
        %382 = vmatprep.subr.bf16.mxu0 0
        %383 = vmatpush1.bf16.msra.mxu0 %v359
        %384 = vmatprep.subr.bf16.mxu0 0
        %385 = vmatpush1.bf16.msra.mxu0 0
        %386 = vmatprep.subr.bf16.mxu0 0
        %387 = vmatpush1.bf16.msra.mxu0 0
        %388 = vmatprep.subr.bf16.mxu0 0
        %389 = vmatpush1.bf16.msra.mxu0 0
        %390 = vmatprep.subr.bf16.mxu0 0
        %391 = vmatpush1.bf16.msra.mxu0 0
        %392 = vmatprep.subr.bf16.mxu0 0
        %393 = vmatpush1.bf16.msra.mxu0 0
        %394 = vmatprep.subr.bf16.mxu0 0
        %395 = vmatpush1.bf16.msra.mxu0 0
        %396 = vmatprep.subr.bf16.mxu0 0
        %397 = vmatpush1.bf16.msra.mxu0 0
        %398 = vmatprep.subr.bf16.mxu0 0
        %399 = vmatpush1.bf16.msra.mxu0 0
        %400 = vmatprep.mubr.bf16.mxu0 0
        %401 = vmatmul.mubr.bf16.gmra.mrb[0].mxu0 %v303
        %v402 = vpop.f32.mrb[0].mxu0
        %v403 = vadd.f32 0.0, %v402
        %v404 = vpop.f32.mrb[0].mxu0
        %v405 = vpop.f32.mrb[0].mxu0
        %v406 = vadd.f32 0.0, %v405
        %v407 = vpop.f32.mrb[0].mxu0
        %408 = vdwg.mxu0
        %v409 = vadd.f32 %v301, %v403
        %v410 = vadd.f32 %v302, %v406
        %411 = vst [vmem:[%s3] sm:$0xff] %v409
        %412 = vst [vmem:[%s3 + $0x8] sm:$0xff] %v410
        // Predicated region
        $region49: #{acil_classifier_forward.1} parent=31 // pred_check
          %p413 = pneg %p104
        $region50: #{acil_classifier_forward.1} parent=31 // pred_check_branch
          %415 = sbr.rel (%p413) target = $region52
        $region51: #{acil_classifier_forward.1} parent=31 // pred_region
          _
        $region52: #{acil_classifier_forward.1} parent=31 // pred_fallthru
          _
        // Predicated region
        $region53: #{acil_classifier_forward.1} parent=31 // pred_check
          %p416 = pneg %p104
        $region54: #{acil_classifier_forward.1} parent=31 // pred_check_branch
          %418 = sbr.rel (%p416) target = $region56
        $region55: #{acil_classifier_forward.1} parent=31 // pred_region
          _
        $region56: #{acil_classifier_forward.1} parent=31 // pred_fallthru
          _
      $region32: #{acil_classifier_forward.1} parent=5 // pred_fallthru
        _
      %p419 = scmp.le.s32.totalorder 2, %s13
      // Predicated region
      $region57: #{acil_classifier_forward.1} parent=5 // pred_check
        %p420 = pneg %p419
      $region58: #{acil_classifier_forward.1} parent=5 // pred_check_branch
        %422 = sbr.rel (%p420) target = $region60
      $region59: #{acil_classifier_forward.1} parent=5 // pred_region
        %s423 = ssub.s32 %s13, 2
      $region60: #{acil_classifier_forward.1} parent=5 // pred_fallthru
        _
    $region6: #{acil_classifier_forward.1} parent=1 // loop_footer
      %s17 = sadd.s32 1, %s13
    $region7: #{acil_classifier_forward.1} parent=1 // loop_footer_branch
      %12 = sbr.rel target = $region3
    $region8: #{acil_classifier_forward.1} parent=1 // loop_exit
      _
    %424 = vsyncpa [#allocation3], 1
    %s425 = scalar_lea.sflag [#allocation3], 1
    %426 = vsyncpa %s425, 1
    %427 = vsyncpa [#allocation5], 1
    %s428 = scalar_lea.sflag [#allocation5], 1
    %429 = vsyncpa %s428, 1

</llo_original>
